<compile_context>
chip_gen: v7x
topology: tpu7x:2x2x1
jax: 0.10.0
libtpu: 0.0.40
codegen_flags: <defaults>
</compile_context>

<pallas_src>
import functools

import jax
import jax.numpy as jnp
from jax.experimental import pallas as pl
from jax.experimental.pallas import tpu as pltpu

_LANE = 128
_SUBLANE = 8
_VREG = _LANE * _SUBLANE  # 1024 elements


def _tversky_partial_kernel(p_ref, t_ref, out_ref, acc_pt, acc_p, acc_t, *, tm):
    """Streams (tm, 128) blocks; accumulates three (8, 128) partial sums."""
    i = pl.program_id(1)

    @pl.when(i == 0)
    def _init():
        acc_pt[...] = jnp.zeros_like(acc_pt)
        acc_p[...] = jnp.zeros_like(acc_p)
        acc_t[...] = jnp.zeros_like(acc_t)

    p = p_ref[...].astype(jnp.float32)
    t = t_ref[...].astype(jnp.float32)

    # Fold each block down to one vreg before accumulating: the reshape stays
    # on (8,128) tile boundaries (no copy) and the leading-axis sum is pure
    # VALU vreg adds — no XLU, no (tm,128) accumulator read-modify-write.
    nv = tm // _SUBLANE
    acc_pt[...] += jnp.sum((p * t).reshape(nv, _SUBLANE, _LANE), axis=0)
    acc_p[...] += jnp.sum(p.reshape(nv, _SUBLANE, _LANE), axis=0)
    acc_t[...] += jnp.sum(t.reshape(nv, _SUBLANE, _LANE), axis=0)

    @pl.when(i == pl.num_programs(1) - 1)
    def _finalize():
        out_ref[0, 0] = acc_pt[...]
        out_ref[0, 1] = acc_p[...]
        out_ref[0, 2] = acc_t[...]


def tversky_loss(predictions, targets, *, alpha=0.3, beta=0.7, smooth=1e-6,
                 reduction="mean", block_rows=None):
    """Pallas TPU implementation of TverskyLoss.forward.

    predictions, targets: arrays of identical shape (e.g. (B, C, H, W)).
    Returns a scalar float32.  'sum' scales by numel; 'mean' and 'none'
    return the unscaled scalar (same as the reference module).
    """
    assert predictions.shape == targets.shape
    numel = int(predictions.size)

    p = predictions.reshape(-1)
    t = targets.reshape(-1)

    # Fallback only: tiny zero-pad so the flat length is a multiple of one
    # vreg (8*128).  Zero padding is neutral for all three sums.  For typical
    # segmentation shapes numel % 1024 == 0 and this is a no-op (no HBM copy).
    if numel % _VREG:
        pad = _VREG - (numel % _VREG)
        p = jnp.pad(p, (0, pad))
        t = jnp.pad(t, (0, pad))

    rows = p.shape[0] // _LANE           # multiple of 8 by construction
    p2 = p.reshape(rows, _LANE)          # layout-free reshape
    t2 = t.reshape(rows, _LANE)

    isz_p = jnp.dtype(p2.dtype).itemsize
    isz_t = jnp.dtype(t2.dtype).itemsize

    # Dtype-aware block size: ~4 MiB per input block (inputs stream in their
    # source dtype and are upcast in-kernel).
    if block_rows is None:
        max_isz = max(isz_p, isz_t)
        block_rows = 8192 if max_isz >= 4 else (16384 if max_isz == 2 else 32768)
    block_rows = max(_SUBLANE, (int(block_rows) // _SUBLANE) * _SUBLANE)

    tm = min(block_rows, rows)           # rows % 8 == 0  ->  tm % 8 == 0
    n_blocks = rows // tm                # >= 1 full blocks go through the kernel

    # Shard the streaming reduction over both TensorCores when there is
    # enough work (~2x on v7x; a cheap sequential loop on single-TC chips).
    n_par = 2 if n_blocks >= 2 else 1
    steps_per_core = n_blocks // n_par
    main_rows = n_par * steps_per_core * tm   # rows covered by the kernel

    kernel = functools.partial(_tversky_partial_kernel, tm=int(tm))

    # 2 pipeline buffers per input block + vreg scratch + per-core outputs,
    # with headroom; floored at 16 MiB (every chip's minimum scoped default).
    vmem_needed = (2 * tm * _LANE * (isz_p + isz_t)
                   + 3 * _SUBLANE * _LANE * 4
                   + 2 * n_par * 3 * _SUBLANE * _LANE * 4)
    vmem_limit = int(min(48 << 20, max(16 << 20, vmem_needed + (4 << 20))))

    cost = pl.CostEstimate(
        flops=5 * numel,
        transcendentals=0,
        bytes_accessed=numel * (isz_p + isz_t) + n_par * 3 * _SUBLANE * _LANE * 4)

    partials = pl.pallas_call(
        kernel,
        out_shape=jax.ShapeDtypeStruct((n_par, 3, _SUBLANE, _LANE), jnp.float32),
        grid_spec=pltpu.PrefetchScalarGridSpec(
            num_scalar_prefetch=0,
            grid=(n_par, steps_per_core),
            in_specs=[
                pl.BlockSpec((tm, _LANE),
                             lambda c, i: (c * steps_per_core + i, 0)),
                pl.BlockSpec((tm, _LANE),
                             lambda c, i: (c * steps_per_core + i, 0)),
            ],
            out_specs=pl.BlockSpec((1, 3, _SUBLANE, _LANE),
                                   lambda c, i: (c, 0, 0, 0)),
            scratch_shapes=[
                pltpu.VMEM((_SUBLANE, _LANE), jnp.float32),  # partial sum p*t
                pltpu.VMEM((_SUBLANE, _LANE), jnp.float32),  # partial sum p
                pltpu.VMEM((_SUBLANE, _LANE), jnp.float32),  # partial sum t
            ],
        ),
        compiler_params=pltpu.CompilerParams(
            dimension_semantics=("parallel", "arbitrary"),
            vmem_limit_bytes=vmem_limit),
        cost_estimate=cost,
    )(p2, t2)

    tp = jnp.sum(partials[:, 0])
    sp = jnp.sum(partials[:, 1])
    st = jnp.sum(partials[:, 2])

    # Tail: rows not covered by whole (n_par * tm)-row kernel blocks
    # (at most n_par*tm - 8 rows).  Kept out of the kernel so the hot loop has
    # zero per-step masking; this is a tiny fused XLA reduction.
    if main_rows < rows:
        p_tail = p2[main_rows:].astype(jnp.float32)
        t_tail = t2[main_rows:].astype(jnp.float32)
        tp = tp + jnp.sum(p_tail * t_tail)
        sp = sp + jnp.sum(p_tail)
        st = st + jnp.sum(t_tail)

    fp = sp - tp                         # sum p * (1 - t)
    fn = st - tp                         # sum (1 - p) * t
    tversky_index = (tp + smooth) / (tp + alpha * fp + beta * fn + smooth)
    loss = (1.0 - tversky_index).astype(jnp.float32)
    if reduction == "sum":
        loss = loss * numel
    # TODO(synk): reduction='none' returns the same scalar as 'mean', exactly
    # like the reference module's else-branch (no per-sample loss is defined).
    return loss


def tversky_loss_ref(predictions, targets, *, alpha=0.3, beta=0.7,
                     smooth=1e-6, reduction="mean"):
    p = predictions.reshape(-1).astype(jnp.float32)
    t = targets.reshape(-1).astype(jnp.float32)
    tp = jnp.sum(p * t)
    fp = jnp.sum(p * (1 - t))
    fn = jnp.sum((1 - p) * t)
    idx = (tp + smooth) / (tp + alpha * fp + beta * fn + smooth)
    loss = 1.0 - idx
    if reduction == "sum":
        loss = loss * p.size
    return loss


if __name__ == "__main__":
    key = jax.random.PRNGKey(0)
    k1, k2, k3, k4, k5, k6 = jax.random.split(key, 6)

    # Main test: (B, C, H, W) = (2, 4, 16, 16) -> 16 rows, single block.
    B, C, H, W = 2, 4, 16, 16
    predictions = jax.nn.sigmoid(jax.random.normal(k1, (B, C, H, W), jnp.float32))
    targets = (jax.random.uniform(k2, (B, C, H, W)) > 0.5).astype(jnp.float32)

    loss = jax.block_until_ready(tversky_loss(predictions, targets))
    ref = tversky_loss_ref(predictions, targets)
    assert jnp.allclose(loss, ref, rtol=1e-5, atol=1e-6), (loss, ref)

    loss_sum = jax.block_until_ready(
        tversky_loss(predictions, targets, reduction="sum"))
    ref_sum = tversky_loss_ref(predictions, targets, reduction="sum")
    assert jnp.allclose(loss_sum, ref_sum, rtol=1e-5, atol=1e-4), (loss_sum, ref_sum)

    # Multi-block + 2-way parallel axis + vreg-pad + wrapper tail:
    # numel = 2*5*16*16 = 2560 -> padded to 3072 -> 24 rows; block_rows=8 ->
    # 3 blocks -> 2 cores x 1 step + 8-row tail.
    p3 = jax.nn.sigmoid(jax.random.normal(k3, (2, 5, 16, 16), jnp.float32))
    t3 = (jax.random.uniform(k4, (2, 5, 16, 16)) > 0.5).astype(jnp.float32)
    loss3 = jax.block_until_ready(tversky_loss(p3, t3, block_rows=8))
    ref3 = tversky_loss_ref(p3, t3)
    assert jnp.allclose(loss3, ref3, rtol=1e-5, atol=1e-6), (loss3, ref3)

    # Even multi-block split, no tail: numel = 3*5*16*16 = 3840 -> 32 rows;
    # block_rows=8 -> 4 blocks -> 2 cores x 2 steps.
    p4 = jax.nn.sigmoid(jax.random.normal(k5, (3, 5, 16, 16), jnp.float32))
    t4 = (jax.random.uniform(k6, (3, 5, 16, 16)) > 0.5).astype(jnp.float32)
    loss4 = jax.block_until_ready(tversky_loss(p4, t4, block_rows=8))
    ref4 = tversky_loss_ref(p4, t4)
    assert jnp.allclose(loss4, ref4, rtol=1e-5, atol=1e-6), (loss4, ref4)

    # bf16 predictions stream in bf16 and are upcast in-kernel.
    pbf = predictions.astype(jnp.bfloat16)
    loss_bf = jax.block_until_ready(tversky_loss(pbf, targets))
    ref_bf = tversky_loss_ref(pbf, targets)
    assert jnp.allclose(loss_bf, ref_bf, rtol=1e-4, atol=1e-5), (loss_bf, ref_bf)

    print("KERNEL_OK")
</pallas_src>

<mosaic_0001>
module attributes {stable_mosaic.version = 11 : i64} {
  func.func @_tversky_partial_kernel(%arg0: i32, %arg1: i32, %arg2: memref<16x128xf32, #tpu.memory_space<vmem>>, %arg3: memref<16x128xf32, #tpu.memory_space<vmem>>, %arg4: memref<1x3x8x128xf32, #tpu.memory_space<vmem>>, %arg5: memref<8x128xf32, #tpu.memory_space<vmem>>, %arg6: memref<8x128xf32, #tpu.memory_space<vmem>>, %arg7: memref<8x128xf32, #tpu.memory_space<vmem>>) attributes {dimension_semantics = [#tpu.dimension_semantics<parallel>, #tpu.dimension_semantics<arbitrary>], iteration_bounds = array<i64: 1, 1>, scalar_prefetch = 0 : i64, scratch_operands = 3 : i64, tpu.core_type = #tpu.core_type<tc>, window_params = [{transform_indices = @transform_0, window_bounds = array<i64: 16, 128>}, {transform_indices = @transform_1, window_bounds = array<i64: 16, 128>}, {transform_indices = @transform_2, window_bounds = array<i64: 1, 3, 8, 128>}]} {
    %c0_i32 = arith.constant 0 : i32
    %0 = arith.cmpi eq, %arg1, %c0_i32 : i32
    %1 = arith.extui %0 : i1 to i32
    %c0_i32_0 = arith.constant 0 : i32
    %2 = arith.cmpi ne, %1, %c0_i32_0 : i32
    scf.if %2 {
      %cst_20 = arith.constant 0.000000e+00 : f32
      %24 = vector.broadcast %cst_20 : f32 to vector<8x128xf32>
      %c0_21 = arith.constant 0 : index
      %c0_22 = arith.constant 0 : index
      %25 = vector.load %arg5[%c0_21, %c0_22] : memref<8x128xf32, #tpu.memory_space<vmem>>, vector<8x128xf32>
      tpu.vector_store %arg5[%c0_21, %c0_22], %24 {strides = array<i32>} : memref<8x128xf32, #tpu.memory_space<vmem>>, vector<8x128xf32>,
      %cst_23 = arith.constant 0.000000e+00 : f32
      %26 = vector.broadcast %cst_23 : f32 to vector<8x128xf32>
      %c0_24 = arith.constant 0 : index
      %c0_25 = arith.constant 0 : index
      %27 = vector.load %arg6[%c0_24, %c0_25] : memref<8x128xf32, #tpu.memory_space<vmem>>, vector<8x128xf32>
      tpu.vector_store %arg6[%c0_24, %c0_25], %26 {strides = array<i32>} : memref<8x128xf32, #tpu.memory_space<vmem>>, vector<8x128xf32>,
      %cst_26 = arith.constant 0.000000e+00 : f32
      %28 = vector.broadcast %cst_26 : f32 to vector<8x128xf32>
      %c0_27 = arith.constant 0 : index
      %c0_28 = arith.constant 0 : index
      %29 = vector.load %arg7[%c0_27, %c0_28] : memref<8x128xf32, #tpu.memory_space<vmem>>, vector<8x128xf32>
      tpu.vector_store %arg7[%c0_27, %c0_28], %28 {strides = array<i32>} : memref<8x128xf32, #tpu.memory_space<vmem>>, vector<8x128xf32>,
    } else {
    }
    %c0 = arith.constant 0 : index
    %c0_1 = arith.constant 0 : index
    %3 = vector.load %arg2[%c0, %c0_1] : memref<16x128xf32, #tpu.memory_space<vmem>>, vector<16x128xf32>
    %c0_2 = arith.constant 0 : index
    %c0_3 = arith.constant 0 : index
    %4 = vector.load %arg3[%c0_2, %c0_3] : memref<16x128xf32, #tpu.memory_space<vmem>>, vector<16x128xf32>
    %c0_4 = arith.constant 0 : index
    %c0_5 = arith.constant 0 : index
    %5 = vector.load %arg5[%c0_4, %c0_5] : memref<8x128xf32, #tpu.memory_space<vmem>>, vector<8x128xf32>
    %6 = arith.mulf %3, %4 : vector<16x128xf32>
    %7 = vector.shape_cast %6 : vector<16x128xf32> to vector<2x8x128xf32>
    %cst = arith.constant dense<0.000000e+00> : vector<8x128xf32>
    %8 = vector.multi_reduction <add>, %7, %cst [0] : vector<2x8x128xf32> to vector<8x128xf32>
    %9 = arith.addf %5, %8 : vector<8x128xf32>
    %c0_6 = arith.constant 0 : index
    %c0_7 = arith.constant 0 : index
    %10 = vector.load %arg5[%c0_6, %c0_7] : memref<8x128xf32, #tpu.memory_space<vmem>>, vector<8x128xf32>
    tpu.vector_store %arg5[%c0_6, %c0_7], %9 {strides = array<i32>} : memref<8x128xf32, #tpu.memory_space<vmem>>, vector<8x128xf32>,
    %c0_8 = arith.constant 0 : index
    %c0_9 = arith.constant 0 : index
    %11 = vector.load %arg6[%c0_8, %c0_9] : memref<8x128xf32, #tpu.memory_space<vmem>>, vector<8x128xf32>
    %12 = vector.shape_cast %3 : vector<16x128xf32> to vector<2x8x128xf32>
    %cst_10 = arith.constant dense<0.000000e+00> : vector<8x128xf32>
    %13 = vector.multi_reduction <add>, %12, %cst_10 [0] : vector<2x8x128xf32> to vector<8x128xf32>
    %14 = arith.addf %11, %13 : vector<8x128xf32>
    %c0_11 = arith.constant 0 : index
    %c0_12 = arith.constant 0 : index
    %15 = vector.load %arg6[%c0_11, %c0_12] : memref<8x128xf32, #tpu.memory_space<vmem>>, vector<8x128xf32>
    tpu.vector_store %arg6[%c0_11, %c0_12], %14 {strides = array<i32>} : memref<8x128xf32, #tpu.memory_space<vmem>>, vector<8x128xf32>,
    %c0_13 = arith.constant 0 : index
    %c0_14 = arith.constant 0 : index
    %16 = vector.load %arg7[%c0_13, %c0_14] : memref<8x128xf32, #tpu.memory_space<vmem>>, vector<8x128xf32>
    %17 = vector.shape_cast %4 : vector<16x128xf32> to vector<2x8x128xf32>
    %cst_15 = arith.constant dense<0.000000e+00> : vector<8x128xf32>
    %18 = vector.multi_reduction <add>, %17, %cst_15 [0] : vector<2x8x128xf32> to vector<8x128xf32>
    %19 = arith.addf %16, %18 : vector<8x128xf32>
    %c0_16 = arith.constant 0 : index
    %c0_17 = arith.constant 0 : index
    %20 = vector.load %arg7[%c0_16, %c0_17] : memref<8x128xf32, #tpu.memory_space<vmem>>, vector<8x128xf32>
    tpu.vector_store %arg7[%c0_16, %c0_17], %19 {strides = array<i32>} : memref<8x128xf32, #tpu.memory_space<vmem>>, vector<8x128xf32>,
    %c0_i32_18 = arith.constant 0 : i32
    %21 = arith.cmpi eq, %arg1, %c0_i32_18 : i32
    %22 = arith.extui %21 : i1 to i32
    %c0_i32_19 = arith.constant 0 : i32
    %23 = arith.cmpi ne, %22, %c0_i32_19 : i32
    scf.if %23 {
      %c0_20 = arith.constant 0 : index
      %c0_21 = arith.constant 0 : index
      %24 = vector.load %arg5[%c0_20, %c0_21] : memref<8x128xf32, #tpu.memory_space<vmem>>, vector<8x128xf32>
      %c0_22 = arith.constant 0 : index
      %c0_23 = arith.constant 0 : index
      %c0_24 = arith.constant 0 : index
      %c0_25 = arith.constant 0 : index
      %25 = vector.load %arg4[%c0_22, %c0_23, %c0_24, %c0_25] : memref<1x3x8x128xf32, #tpu.memory_space<vmem>>, vector<1x1x8x128xf32>
      %26 = vector.shape_cast %25 : vector<1x1x8x128xf32> to vector<8x128xf32>
      %27 = vector.shape_cast %24 : vector<8x128xf32> to vector<1x1x8x128xf32>
      tpu.vector_store %arg4[%c0_22, %c0_23, %c0_24, %c0_25], %27 {strides = array<i32>} : memref<1x3x8x128xf32, #tpu.memory_space<vmem>>, vector<1x1x8x128xf32>,
      %c0_26 = arith.constant 0 : index
      %c0_27 = arith.constant 0 : index
      %28 = vector.load %arg6[%c0_26, %c0_27] : memref<8x128xf32, #tpu.memory_space<vmem>>, vector<8x128xf32>
      %c0_28 = arith.constant 0 : index
      %c1 = arith.constant 1 : index
      %c0_29 = arith.constant 0 : index
      %c0_30 = arith.constant 0 : index
      %29 = vector.load %arg4[%c0_28, %c1, %c0_29, %c0_30] : memref<1x3x8x128xf32, #tpu.memory_space<vmem>>, vector<1x1x8x128xf32>
      %30 = vector.shape_cast %29 : vector<1x1x8x128xf32> to vector<8x128xf32>
      %31 = vector.shape_cast %28 : vector<8x128xf32> to vector<1x1x8x128xf32>
      tpu.vector_store %arg4[%c0_28, %c1, %c0_29, %c0_30], %31 {strides = array<i32>} : memref<1x3x8x128xf32, #tpu.memory_space<vmem>>, vector<1x1x8x128xf32>,
      %c0_31 = arith.constant 0 : index
      %c0_32 = arith.constant 0 : index
      %32 = vector.load %arg7[%c0_31, %c0_32] : memref<8x128xf32, #tpu.memory_space<vmem>>, vector<8x128xf32>
      %c0_33 = arith.constant 0 : index
      %c2 = arith.constant 2 : index
      %c0_34 = arith.constant 0 : index
      %c0_35 = arith.constant 0 : index
      %33 = vector.load %arg4[%c0_33, %c2, %c0_34, %c0_35] : memref<1x3x8x128xf32, #tpu.memory_space<vmem>>, vector<1x1x8x128xf32>
      %34 = vector.shape_cast %33 : vector<1x1x8x128xf32> to vector<8x128xf32>
      %35 = vector.shape_cast %32 : vector<8x128xf32> to vector<1x1x8x128xf32>
      tpu.vector_store %arg4[%c0_33, %c2, %c0_34, %c0_35], %35 {strides = array<i32>} : memref<1x3x8x128xf32, #tpu.memory_space<vmem>>, vector<1x1x8x128xf32>,
    } else {
    }
    return
  }
  func.func @transform_0(%arg0: i32, %arg1: i32) -> (i32, i32) {
    %c1_i32 = arith.constant 1 : i32
    %0 = arith.muli %arg0, %c1_i32 : i32
    %1 = arith.addi %0, %arg1 : i32
    %c0_i32 = arith.constant 0 : i32
    %c0_i32_0 = arith.constant 0 : i32
    return %1, %c0_i32 : i32, i32
  }
  func.func @transform_1(%arg0: i32, %arg1: i32) -> (i32, i32) {
    %c1_i32 = arith.constant 1 : i32
    %0 = arith.muli %arg0, %c1_i32 : i32
    %1 = arith.addi %0, %arg1 : i32
    %c0_i32 = arith.constant 0 : i32
    %c0_i32_0 = arith.constant 0 : i32
    return %1, %c0_i32 : i32, i32
  }
  func.func @transform_2(%arg0: i32, %arg1: i32) -> (i32, i32, i32, i32) {
    %c0_i32 = arith.constant 0 : i32
    %c0_i32_0 = arith.constant 0 : i32
    %c0_i32_1 = arith.constant 0 : i32
    %c0_i32_2 = arith.constant 0 : i32
    return %arg0, %c0_i32, %c0_i32_0, %c0_i32_1 : i32, i32, i32, i32
  }
}

</mosaic_0001>

<llo_original>
// kernel: tpu_custom_call.1
$region0: #{tpu_custom_call.1}
  #allocation0 [shape = 'u32[]', space=smem, size = 0x4, offset = 0x4, fixed_abs, tag = 'smem constant byte address 0x4 - core index']
  #allocation1 [shape = 'u32[144,128]{1,0:T(1,128)}', space=vmem, size = 0x12000, scoped, tag = 'internal scratch']
  #allocation2 [shape = 'f32[8,128]{1,0:T(8,128)}', space=vmem, size = 0x1000, scoped, tag = 'scratch operand']
  #allocation3 [shape = 'f32[8,128]{1,0:T(8,128)}', space=vmem, size = 0x1000, scoped, tag = 'scratch operand']
  #allocation4 [shape = 'f32[8,128]{1,0:T(8,128)}', space=vmem, size = 0x1000, scoped, tag = 'scratch operand']
  %s0 = inlined_call_operand.hbm [shape: f32[16,128], index: 0, kind: input, shape index: {}]
  %s1 = inlined_call_operand.hbm [shape: f32[16,128], index: 1, kind: input, shape index: {}]
  %s2 = inlined_call_operand.hbm [shape: f32[1,3,8,128], index: 2, kind: output, shape index: {}]
  %s3 = sld [smem:[#allocation0]]
  $region34: #{tpu_custom_call.1} parent=0
    _
  %s5 = ssub.s32 1, %s3
  %s6 = scalar_select 0, %s5, %s3
  $region1: #{tpu_custom_call.1} parent=0
    #allocation5 [shape = 'u8[8192]{0}', space=vmem, size = 0x2000, scoped, tag = 'input window, operand 0, single buffered']
    #allocation6 [shape = 's32[1]{0}', space=sflag, size = 0x4, scoped, tag = 'scoped memory for tpu_custom_call.1']
    #allocation7 [shape = 's32[1]{0}', space=sflag, size = 0x4, scoped, tag = 'scoped memory for tpu_custom_call.1']
    #allocation8 [shape = 'u8[8192]{0}', space=vmem, size = 0x2000, scoped, tag = 'input window, operand 1, single buffered']
    #allocation9 [shape = 's32[1]{0}', space=sflag, size = 0x4, scoped, tag = 'scoped memory for tpu_custom_call.1']
    #allocation10 [shape = 'u8[12288]{0}', space=vmem, size = 0x3000, scoped, tag = 'output window, operand 0, single buffered']
    %7 = vsyncpa [#allocation6], 0
    %8 = vsyncpa [#allocation9], 0
    %9 = vsyncpa [#allocation7], 0
    // Predicated region
    $region2: #{tpu_custom_call.1} parent=1 // pred_check
      _
    $region3: #{tpu_custom_call.1} parent=1 // pred_check_branch
      %11 = sbr.rel (0) target = $region5
    $region4: #{tpu_custom_call.1} parent=1 // pred_region
      %s12 = sadd.s32 0, 0
      %s13 = smul.u32 2, %s12
      %s15 = ssub.s32 256, 256
      %16 = vsyncadd [#allocation6], %s15
      %s17 = smul.addr %s13, 128
      %s18 = scalar_lea.hbm %s0, %s17
      %s19 = sshll.u32 [#allocation5], 4
      %s20 = int_to_ptr.vmem [resolvable:$true] %s19
      %25 = dma.hbm_to_vmem [thread:$0]  %s18, 256, %s20, [#allocation6], 128, 128, 8
    $region5: #{tpu_custom_call.1} parent=1 // pred_fallthru
      _
    // Predicated region
    $region6: #{tpu_custom_call.1} parent=1 // pred_check
      _
    $region7: #{tpu_custom_call.1} parent=1 // pred_check_branch
      %27 = sbr.rel (0) target = $region9
    $region8: #{tpu_custom_call.1} parent=1 // pred_region
      %s28 = sadd.s32 0, 0
      %s29 = smul.u32 2, %s28
      %s31 = ssub.s32 256, 256
      %32 = vsyncadd [#allocation9], %s31
      %s33 = smul.addr %s29, 128
      %s34 = scalar_lea.hbm %s1, %s33
      %s35 = sshll.u32 [#allocation8], 4
      %s36 = int_to_ptr.vmem [resolvable:$true] %s35
      %41 = dma.hbm_to_vmem [thread:$0]  %s34, 256, %s36, [#allocation9], 128, 128, 8
    $region9: #{tpu_custom_call.1} parent=1 // pred_fallthru
      _
    // Predicated region
    $region10: #{tpu_custom_call.1} parent=1 // pred_check
      _
    $region11: #{tpu_custom_call.1} parent=1 // pred_check_branch
      %43 = sbr.rel (0) target = $region13
    $region12: #{tpu_custom_call.1} parent=1 // pred_region
      %44 = dma.done [#allocation6], 256
    $region13: #{tpu_custom_call.1} parent=1 // pred_fallthru
      _
    // Predicated region
    $region14: #{tpu_custom_call.1} parent=1 // pred_check
      _
    $region15: #{tpu_custom_call.1} parent=1 // pred_check_branch
      %46 = sbr.rel (0) target = $region17
    $region16: #{tpu_custom_call.1} parent=1 // pred_region
      %47 = dma.done [#allocation9], 256
    $region17: #{tpu_custom_call.1} parent=1 // pred_fallthru
      _
    %s48 = sadd.s32 0, 0
    %s49 = smul.u32 2, %s48
    %s50 = sadd.s32 0, 0
    %s51 = smul.u32 2, %s50
    %p52 = scmp.eq.s32.totalorder 0, 0
    // Predicated region
    $region18: #{tpu_custom_call.1} parent=1 // pred_check
      %p53 = pneg %p52
    $region19: #{tpu_custom_call.1} parent=1 // pred_check_branch
      %55 = sbr.rel (%p53) target = $region21
    $region20: #{tpu_custom_call.1} parent=1 // pred_region
      %56 = vst [vmem:[#allocation2] sm:$0xff] 0.0
      %57 = vst [vmem:[#allocation3] sm:$0xff] 0.0
      %58 = vst [vmem:[#allocation4] sm:$0xff] 0.0
    $region21: #{tpu_custom_call.1} parent=1 // pred_fallthru
      _
    %v59 = vld [vmem:[#allocation5] sm:$0xff]
    %v60 = vld [vmem:[#allocation5 + $0x8] sm:$0xff]
    %v61 = vld [vmem:[#allocation8] sm:$0xff]
    %v62 = vld [vmem:[#allocation8 + $0x8] sm:$0xff]
    %v63 = vld [vmem:[#allocation2] sm:$0xff]
    %v64 = vmul.f32 %v59, %v61
    %v65 = vmul.f32 %v60, %v62
    %v66 = vadd.f32 %v64, %v65
    %v67 = vadd.f32 %v63, %v66
    %68 = vst [vmem:[#allocation2] sm:$0xff] %v67
    %v69 = vld [vmem:[#allocation3] sm:$0xff]
    %v70 = vadd.f32 %v59, %v60
    %v71 = vadd.f32 %v69, %v70
    %72 = vst [vmem:[#allocation3] sm:$0xff] %v71
    %v73 = vld [vmem:[#allocation4] sm:$0xff]
    %v74 = vadd.f32 %v61, %v62
    %v75 = vadd.f32 %v73, %v74
    %76 = vst [vmem:[#allocation4] sm:$0xff] %v75
    // Predicated region
    $region22: #{tpu_custom_call.1} parent=1 // pred_check
      %p77 = pneg %p52
    $region23: #{tpu_custom_call.1} parent=1 // pred_check_branch
      %79 = sbr.rel (%p77) target = $region25
    $region24: #{tpu_custom_call.1} parent=1 // pred_region
      %v80 = vld [vmem:[#allocation2] sm:$0xff]
      %81 = vst [vmem:[#allocation10] sm:$0xff] %v80
      %v82 = vld [vmem:[#allocation3] sm:$0xff]
      %s83 = scalar_lea.vmem [#allocation10], 8
      %84 = vst [vmem:[%s83] sm:$0xff] %v82
      %v85 = vld [vmem:[#allocation4] sm:$0xff]
      %s86 = scalar_lea.vmem [#allocation10], 16
      %87 = vst [vmem:[%s86] sm:$0xff] %v85
    $region25: #{tpu_custom_call.1} parent=1 // pred_fallthru
      _
    // Predicated region
    $region26: #{tpu_custom_call.1} parent=1 // pred_check
      _
    $region27: #{tpu_custom_call.1} parent=1 // pred_check_branch
      %89 = sbr.rel (0) target = $region29
    $region28: #{tpu_custom_call.1} parent=1 // pred_region
      %s91 = ssub.s32 384, 384
      %92 = vsyncadd [#allocation7], %s91
      %s93 = sshll.u32 [#allocation10], 4
      %s94 = int_to_ptr.vmem [resolvable:$true] %s93
      %99 = dma.vmem_to_hbm [thread:$0]  %s94, 384, %s2, [#allocation7], 128, 128, 8
    $region29: #{tpu_custom_call.1} parent=1 // pred_fallthru
      _
    // Predicated region
    $region30: #{tpu_custom_call.1} parent=1 // pred_check
      _
    $region31: #{tpu_custom_call.1} parent=1 // pred_check_branch
      %101 = sbr.rel (0) target = $region33
    $region32: #{tpu_custom_call.1} parent=1 // pred_region
      %102 = dma.done [#allocation7], 384
    $region33: #{tpu_custom_call.1} parent=1 // pred_fallthru
      _
    %103 = vsyncpa [#allocation6], 1
    %104 = vsyncpa [#allocation9], 1
    %105 = vsyncpa [#allocation7], 1

</llo_original>
